<compile_context>
chip_gen: v7x
topology: tpu7x:2x2x1
jax: 0.10.0
libtpu: 0.0.40
codegen_flags: <defaults>
</compile_context>

<pallas_src>
import functools

import jax
import jax.numpy as jnp
from jax.experimental import pallas as pl
from jax.experimental.pallas import tpu as pltpu


def _lsa_kernel(x_ref, w_ref, b_ref, wo_ref, bo_ref, bd_ref, o_ref, *, C, N, bb):
    # Resident operands (constant index_map -> loaded once, reused every step).
    w = w_ref[...]            # (2C+16, C)   rows: [k(C); ones(8); v(C); q(8)]
    b = b_ref[...]            # (2C+16, 1)
    wo = wo_ref[...]          # (C, C)
    bo = bo_ref[...]          # (C, 1)
    bd = bd_ref[...]          # (PN, PN)  block-diagonal 0/1 patch-grouping matrix
    inv_n = 1.0 / N

    for bi in range(bb):      # tiny static unrolled loop over the batch block
        x = x_ref[bi]         # (C, PN), lane-dense (PN = P*N, j = p*N + n)

        # Fused projection: one MXU push produces [k ; const 1 ; v ; q x8].
        kvq = jnp.dot(w, x, preferred_element_type=jnp.float32) + b   # (2C+16, PN)

        q8 = kvq[2 * C + 8:2 * C + 16, :]          # (8, PN), 8 identical q rows
        # Per-pixel-group mean over the N patch lanes (shift-invariant softmax
        # stabilizer; guarantees the softmax denominator is >= 1).
        mean = jnp.dot(q8, bd, preferred_element_type=jnp.float32) * inv_n
        e8 = jnp.exp(q8 - mean)                    # (8, PN)

        # [k ; 1] * e  ->  [k*e ; e]; one BD matmul gives both sum_n(k*e) and
        # sum_n(e) per group, already broadcast back over n.
        ke_e = kvq[0:C + 8, :] * e8[0:1, :]        # (C+8, PN)
        red = jnp.dot(ke_e, bd, preferred_element_type=jnp.float32)   # (C+8, PN)
        cv = red[0:C, :] * (1.0 / red[C:C + 1, :])  # context vector, (C, PN)

        v = kvq[C + 8:2 * C + 8, :]                # (C, PN)
        out = jnp.maximum(v, 0.0) * cv             # relu(v) * cv

        # Output 1x1 conv.
        out = jnp.dot(wo, out, preferred_element_type=jnp.float32) + bo
        o_ref[bi] = out.astype(o_ref.dtype)


def linear_self_attention(x_nchw, w_qkv, b_qkv, w_out, b_out, *, batches_per_step=None):
    """x_nchw: (B, C, P, N) float32.
       Conv 1x1 weights in PyTorch layout: w_qkv: (1+2C, C), b_qkv: (1+2C,),
       w_out: (C, C), b_out: (C,)."""
    B, C, P, N = x_nchw.shape
    PN = P * N
    f32 = jnp.float32

    if batches_per_step is None:
        # Whole batch in one grid step (best for single-TC v5e/v6e; total
        # compute is ~us-scale so per-step overhead dominates).  Set to 1 for
        # one parallel step per batch to engage both v7x TensorCores.
        batches_per_step = B
    bb = batches_per_step
    assert B % bb == 0, "batch must be divisible by batches_per_step"

    # Contiguous (free) reshape only — no transposes in the wrapper.
    x = x_nchw.reshape(B, C, PN)

    # Fused / padded projection weights.  PyTorch row order is [q(1); k(C); v(C)];
    # we re-order and pad to [k(C); ones(8); v(C); q x8] so every slice used in
    # the kernel is a whole number of 8-sublane granules (for C % 8 == 0) and the
    # constant-1 rows give the softmax numerator "e" for free from the same matmul.
    w_k = w_qkv[1:1 + C]
    w_v = w_qkv[1 + C:1 + 2 * C]
    w_q = w_qkv[0:1]
    w_fused = jnp.concatenate(
        [w_k, jnp.zeros((8, C), f32), w_v, jnp.tile(w_q, (8, 1))], axis=0)       # (2C+16, C)
    b_fused = jnp.concatenate(
        [b_qkv[1:1 + C], jnp.ones((8,), f32), b_qkv[1 + C:1 + 2 * C],
         jnp.broadcast_to(b_qkv[0:1], (8,))]).reshape(2 * C + 16, 1)             # (2C+16, 1)
    b_o = b_out.reshape(C, 1)

    # Block-diagonal patch-grouping matrix, built once OUTSIDE the kernel:
    # bd[j, j'] = 1 iff lanes j, j' (= p*N + n) share the same pixel index p.
    bd = jnp.kron(jnp.eye(P, dtype=f32), jnp.ones((N, N), dtype=f32))            # (PN, PN)

    kernel = functools.partial(_lsa_kernel, C=C, N=N, bb=bb)
    const = lambda g: (0, 0)   # resident across grid steps

    out = pl.pallas_call(
        kernel,
        out_shape=jax.ShapeDtypeStruct((B, C, PN), f32),
        grid=(B // bb,),
        in_specs=[
            pl.BlockSpec((bb, C, PN), lambda g: (g, 0, 0)),   # x (lane-dense)
            pl.BlockSpec((2 * C + 16, C), const),             # fused projection weight
            pl.BlockSpec((2 * C + 16, 1), const),             # fused projection bias
            pl.BlockSpec((C, C), const),                      # out-proj weight
            pl.BlockSpec((C, 1), const),                      # out-proj bias
            pl.BlockSpec((PN, PN), const),                    # block-diagonal mask
        ],
        out_specs=pl.BlockSpec((bb, C, PN), lambda g: (g, 0, 0)),
        compiler_params=pltpu.CompilerParams(
            dimension_semantics=("parallel",)),
    )(x, w_fused, b_fused, w_out, b_o, bd)

    return out.reshape(B, C, P, N)   # free reshape back to (B, C, P, N)


def _reference(x, w_qkv, b_qkv, w_out, b_out):
    """Pure-JAX NCHW reference mirroring the PyTorch forward (dropout p=0 -> id)."""
    B, C, P, N = x.shape
    qkv = jnp.einsum('bcpn,oc->bopn', x, w_qkv) + b_qkv[None, :, None, None]
    q, k, v = qkv[:, :1], qkv[:, 1:1 + C], qkv[:, 1 + C:]
    scores = jax.nn.softmax(q, axis=-1)
    cv = jnp.sum(k * scores, axis=-1, keepdims=True)
    out = jax.nn.relu(v) * cv
    return jnp.einsum('bcpn,oc->bopn', out, w_out) + b_out[None, :, None, None]


if __name__ == "__main__":
    B, C, P, N = 2, 32, 16, 16   # dim=32, 16 pixels/patch, 16 patches

    key = jax.random.PRNGKey(0)
    kx, k1, k2, k3, k4 = jax.random.split(key, 5)

    x = jax.random.normal(kx, (B, C, P, N), dtype=jnp.float32)
    # Deterministic synthetic parameters (Conv2d 1x1 weights, squeezed).
    w_qkv = jax.random.normal(k1, (1 + 2 * C, C), dtype=jnp.float32) * (1.0 / C ** 0.5)
    b_qkv = jax.random.normal(k2, (1 + 2 * C,), dtype=jnp.float32) * 0.02
    w_out = jax.random.normal(k3, (C, C), dtype=jnp.float32) * (1.0 / C ** 0.5)
    b_out = jax.random.normal(k4, (C,), dtype=jnp.float32) * 0.02

    y = linear_self_attention(x, w_qkv, b_qkv, w_out, b_out)
    y = jax.block_until_ready(y)

    y_ref = _reference(x, w_qkv, b_qkv, w_out, b_out)
    assert y.shape == (B, C, P, N)
    assert jnp.allclose(y, y_ref, atol=1e-4, rtol=1e-4), \
        float(jnp.max(jnp.abs(y - y_ref)))

    print("KERNEL_OK")
</pallas_src>

<mosaic_0001>
module attributes {stable_mosaic.version = 11 : i64} {
  func.func @_lsa_kernel(%arg0: i32, %arg1: memref<2x32x256xf32, #tpu.memory_space<vmem>>, %arg2: memref<80x32xf32, #tpu.memory_space<vmem>>, %arg3: memref<80x1xf32, #tpu.memory_space<vmem>>, %arg4: memref<32x32xf32, #tpu.memory_space<vmem>>, %arg5: memref<32x1xf32, #tpu.memory_space<vmem>>, %arg6: memref<256x256xf32, #tpu.memory_space<vmem>>, %arg7: memref<2x32x256xf32, #tpu.memory_space<vmem>>) attributes {dimension_semantics = [#tpu.dimension_semantics<parallel>], iteration_bounds = array<i64: 1>, scalar_prefetch = 0 : i64, scratch_operands = 0 : i64, tpu.core_type = #tpu.core_type<tc>, window_params = [{transform_indices = @transform_0, window_bounds = array<i64: 2, 32, 256>}, {pipeline_mode = #tpu.pipeline_mode<synchronous>, transform_indices = @transform_1, window_bounds = array<i64: 80, 32>}, {pipeline_mode = #tpu.pipeline_mode<synchronous>, transform_indices = @transform_2, window_bounds = array<i64: 80, 1>}, {pipeline_mode = #tpu.pipeline_mode<synchronous>, transform_indices = @transform_3, window_bounds = array<i64: 32, 32>}, {pipeline_mode = #tpu.pipeline_mode<synchronous>, transform_indices = @transform_4, window_bounds = array<i64: 32, 1>}, {pipeline_mode = #tpu.pipeline_mode<synchronous>, transform_indices = @transform_5, window_bounds = array<i64: 256, 256>}, {transform_indices = @transform_6, window_bounds = array<i64: 2, 32, 256>}]} {
    %c0 = arith.constant 0 : index
    %c0_0 = arith.constant 0 : index
    %0 = vector.load %arg2[%c0, %c0_0] : memref<80x32xf32, #tpu.memory_space<vmem>>, vector<80x32xf32>
    %c0_1 = arith.constant 0 : index
    %c0_2 = arith.constant 0 : index
    %1 = vector.load %arg3[%c0_1, %c0_2] : memref<80x1xf32, #tpu.memory_space<vmem>>, vector<80x1xf32>
    %c0_3 = arith.constant 0 : index
    %c0_4 = arith.constant 0 : index
    %2 = vector.load %arg4[%c0_3, %c0_4] : memref<32x32xf32, #tpu.memory_space<vmem>>, vector<32x32xf32>
    %c0_5 = arith.constant 0 : index
    %c0_6 = arith.constant 0 : index
    %3 = vector.load %arg5[%c0_5, %c0_6] : memref<32x1xf32, #tpu.memory_space<vmem>>, vector<32x1xf32>
    %c0_7 = arith.constant 0 : index
    %c0_8 = arith.constant 0 : index
    %4 = vector.load %arg6[%c0_7, %c0_8] : memref<256x256xf32, #tpu.memory_space<vmem>>, vector<256x256xf32>
    %c0_9 = arith.constant 0 : index
    %c0_10 = arith.constant 0 : index
    %c0_11 = arith.constant 0 : index
    %5 = vector.load %arg1[%c0_9, %c0_10, %c0_11] : memref<2x32x256xf32, #tpu.memory_space<vmem>>, vector<1x32x256xf32>
    %6 = vector.shape_cast %5 : vector<1x32x256xf32> to vector<32x256xf32>
    %cst = arith.constant dense<0.000000e+00> : vector<80x256xf32>
    %7 = tpu.matmul %0, %6, %cst {dimension_numbers = #tpu.dot_dimension_numbers<[1], [0], [0], [1], [0, 0, 1, 1], [], []>} : vector<80x32xf32>, vector<32x256xf32>, vector<80x256xf32> -> vector<80x256xf32>
    %8 = vector.broadcast %1 : vector<80x1xf32> to vector<80x256xf32>
    %9 = arith.addf %7, %8 : vector<80x256xf32>
    %10 = vector.extract_strided_slice %9 {offsets = [72, 0], sizes = [8, 256], strides = [1, 1]} : vector<80x256xf32> to vector<8x256xf32>
    %cst_12 = arith.constant dense<0.000000e+00> : vector<8x256xf32>
    %11 = tpu.matmul %10, %4, %cst_12 {dimension_numbers = #tpu.dot_dimension_numbers<[1], [0], [0], [1], [0, 0, 1, 1], [], []>} : vector<8x256xf32>, vector<256x256xf32>, vector<8x256xf32> -> vector<8x256xf32>
    %cst_13 = arith.constant 6.250000e-02 : f32
    %12 = vector.broadcast %cst_13 : f32 to vector<8x256xf32>
    %13 = arith.mulf %11, %12 : vector<8x256xf32>
    %14 = arith.subf %10, %13 : vector<8x256xf32>
    %15 = math.exp %14 : vector<8x256xf32>
    %16 = vector.extract_strided_slice %9 {offsets = [0, 0], sizes = [40, 256], strides = [1, 1]} : vector<80x256xf32> to vector<40x256xf32>
    %17 = vector.extract_strided_slice %15 {offsets = [0, 0], sizes = [1, 256], strides = [1, 1]} : vector<8x256xf32> to vector<1x256xf32>
    %18 = vector.broadcast %17 : vector<1x256xf32> to vector<40x256xf32>
    %19 = arith.mulf %16, %18 : vector<40x256xf32>
    %cst_14 = arith.constant dense<0.000000e+00> : vector<40x256xf32>
    %20 = tpu.matmul %19, %4, %cst_14 {dimension_numbers = #tpu.dot_dimension_numbers<[1], [0], [0], [1], [0, 0, 1, 1], [], []>} : vector<40x256xf32>, vector<256x256xf32>, vector<40x256xf32> -> vector<40x256xf32>
    %21 = vector.extract_strided_slice %20 {offsets = [0, 0], sizes = [32, 256], strides = [1, 1]} : vector<40x256xf32> to vector<32x256xf32>
    %22 = vector.extract_strided_slice %20 {offsets = [32, 0], sizes = [1, 256], strides = [1, 1]} : vector<40x256xf32> to vector<1x256xf32>
    %cst_15 = arith.constant 1.000000e+00 : f32
    %23 = vector.broadcast %cst_15 : f32 to vector<1x256xf32>
    %24 = arith.divf %23, %22 : vector<1x256xf32>
    %25 = vector.broadcast %24 : vector<1x256xf32> to vector<32x256xf32>
    %26 = arith.mulf %21, %25 : vector<32x256xf32>
    %27 = vector.extract_strided_slice %9 {offsets = [40, 0], sizes = [32, 256], strides = [1, 1]} : vector<80x256xf32> to vector<32x256xf32>
    %cst_16 = arith.constant 0.000000e+00 : f32
    %28 = vector.broadcast %cst_16 : f32 to vector<32x256xf32>
    %29 = arith.maximumf %27, %28 : vector<32x256xf32>
    %30 = arith.mulf %29, %26 : vector<32x256xf32>
    %cst_17 = arith.constant dense<0.000000e+00> : vector<32x256xf32>
    %31 = tpu.matmul %2, %30, %cst_17 {dimension_numbers = #tpu.dot_dimension_numbers<[1], [0], [0], [1], [0, 0, 1, 1], [], []>} : vector<32x32xf32>, vector<32x256xf32>, vector<32x256xf32> -> vector<32x256xf32>
    %32 = vector.broadcast %3 : vector<32x1xf32> to vector<32x256xf32>
    %33 = arith.addf %31, %32 : vector<32x256xf32>
    %c0_18 = arith.constant 0 : index
    %c0_19 = arith.constant 0 : index
    %c0_20 = arith.constant 0 : index
    %34 = vector.load %arg7[%c0_18, %c0_19, %c0_20] : memref<2x32x256xf32, #tpu.memory_space<vmem>>, vector<1x32x256xf32>
    %35 = vector.shape_cast %34 : vector<1x32x256xf32> to vector<32x256xf32>
    %36 = vector.shape_cast %33 : vector<32x256xf32> to vector<1x32x256xf32>
    tpu.vector_store %arg7[%c0_18, %c0_19, %c0_20], %36 {strides = array<i32>} : memref<2x32x256xf32, #tpu.memory_space<vmem>>, vector<1x32x256xf32>,
    %c1 = arith.constant 1 : index
    %c0_21 = arith.constant 0 : index
    %c0_22 = arith.constant 0 : index
    %37 = vector.load %arg1[%c1, %c0_21, %c0_22] : memref<2x32x256xf32, #tpu.memory_space<vmem>>, vector<1x32x256xf32>
    %38 = vector.shape_cast %37 : vector<1x32x256xf32> to vector<32x256xf32>
    %cst_23 = arith.constant dense<0.000000e+00> : vector<80x256xf32>
    %39 = tpu.matmul %0, %38, %cst_23 {dimension_numbers = #tpu.dot_dimension_numbers<[1], [0], [0], [1], [0, 0, 1, 1], [], []>} : vector<80x32xf32>, vector<32x256xf32>, vector<80x256xf32> -> vector<80x256xf32>
    %40 = vector.broadcast %1 : vector<80x1xf32> to vector<80x256xf32>
    %41 = arith.addf %39, %40 : vector<80x256xf32>
    %42 = vector.extract_strided_slice %41 {offsets = [72, 0], sizes = [8, 256], strides = [1, 1]} : vector<80x256xf32> to vector<8x256xf32>
    %cst_24 = arith.constant dense<0.000000e+00> : vector<8x256xf32>
    %43 = tpu.matmul %42, %4, %cst_24 {dimension_numbers = #tpu.dot_dimension_numbers<[1], [0], [0], [1], [0, 0, 1, 1], [], []>} : vector<8x256xf32>, vector<256x256xf32>, vector<8x256xf32> -> vector<8x256xf32>
    %cst_25 = arith.constant 6.250000e-02 : f32
    %44 = vector.broadcast %cst_25 : f32 to vector<8x256xf32>
    %45 = arith.mulf %43, %44 : vector<8x256xf32>
    %46 = arith.subf %42, %45 : vector<8x256xf32>
    %47 = math.exp %46 : vector<8x256xf32>
    %48 = vector.extract_strided_slice %41 {offsets = [0, 0], sizes = [40, 256], strides = [1, 1]} : vector<80x256xf32> to vector<40x256xf32>
    %49 = vector.extract_strided_slice %47 {offsets = [0, 0], sizes = [1, 256], strides = [1, 1]} : vector<8x256xf32> to vector<1x256xf32>
    %50 = vector.broadcast %49 : vector<1x256xf32> to vector<40x256xf32>
    %51 = arith.mulf %48, %50 : vector<40x256xf32>
    %cst_26 = arith.constant dense<0.000000e+00> : vector<40x256xf32>
    %52 = tpu.matmul %51, %4, %cst_26 {dimension_numbers = #tpu.dot_dimension_numbers<[1], [0], [0], [1], [0, 0, 1, 1], [], []>} : vector<40x256xf32>, vector<256x256xf32>, vector<40x256xf32> -> vector<40x256xf32>
    %53 = vector.extract_strided_slice %52 {offsets = [0, 0], sizes = [32, 256], strides = [1, 1]} : vector<40x256xf32> to vector<32x256xf32>
    %54 = vector.extract_strided_slice %52 {offsets = [32, 0], sizes = [1, 256], strides = [1, 1]} : vector<40x256xf32> to vector<1x256xf32>
    %cst_27 = arith.constant 1.000000e+00 : f32
    %55 = vector.broadcast %cst_27 : f32 to vector<1x256xf32>
    %56 = arith.divf %55, %54 : vector<1x256xf32>
    %57 = vector.broadcast %56 : vector<1x256xf32> to vector<32x256xf32>
    %58 = arith.mulf %53, %57 : vector<32x256xf32>
    %59 = vector.extract_strided_slice %41 {offsets = [40, 0], sizes = [32, 256], strides = [1, 1]} : vector<80x256xf32> to vector<32x256xf32>
    %cst_28 = arith.constant 0.000000e+00 : f32
    %60 = vector.broadcast %cst_28 : f32 to vector<32x256xf32>
    %61 = arith.maximumf %59, %60 : vector<32x256xf32>
    %62 = arith.mulf %61, %58 : vector<32x256xf32>
    %cst_29 = arith.constant dense<0.000000e+00> : vector<32x256xf32>
    %63 = tpu.matmul %2, %62, %cst_29 {dimension_numbers = #tpu.dot_dimension_numbers<[1], [0], [0], [1], [0, 0, 1, 1], [], []>} : vector<32x32xf32>, vector<32x256xf32>, vector<32x256xf32> -> vector<32x256xf32>
    %64 = vector.broadcast %3 : vector<32x1xf32> to vector<32x256xf32>
    %65 = arith.addf %63, %64 : vector<32x256xf32>
    %c1_30 = arith.constant 1 : index
    %c0_31 = arith.constant 0 : index
    %c0_32 = arith.constant 0 : index
    %66 = vector.load %arg7[%c1_30, %c0_31, %c0_32] : memref<2x32x256xf32, #tpu.memory_space<vmem>>, vector<1x32x256xf32>
    %67 = vector.shape_cast %66 : vector<1x32x256xf32> to vector<32x256xf32>
    %68 = vector.shape_cast %65 : vector<32x256xf32> to vector<1x32x256xf32>
    tpu.vector_store %arg7[%c1_30, %c0_31, %c0_32], %68 {strides = array<i32>} : memref<2x32x256xf32, #tpu.memory_space<vmem>>, vector<1x32x256xf32>,
    return
  }
  func.func @transform_0(%arg0: i32) -> (i32, i32, i32) {
    %c0_i32 = arith.constant 0 : i32
    %c0_i32_0 = arith.constant 0 : i32
    %c0_i32_1 = arith.constant 0 : i32
    return %arg0, %c0_i32, %c0_i32_0 : i32, i32, i32
  }
  func.func @transform_1(%arg0: i32) -> (i32, i32) {
    %c0_i32 = arith.constant 0 : i32
    %c0_i32_0 = arith.constant 0 : i32
    %c0_i32_1 = arith.constant 0 : i32
    return %c0_i32, %c0_i32_0 : i32, i32
  }
  func.func @transform_2(%arg0: i32) -> (i32, i32) {
    %c0_i32 = arith.constant 0 : i32
    %c0_i32_0 = arith.constant 0 : i32
    %c0_i32_1 = arith.constant 0 : i32
    return %c0_i32, %c0_i32_0 : i32, i32
  }
  func.func @transform_3(%arg0: i32) -> (i32, i32) {
    %c0_i32 = arith.constant 0 : i32
    %c0_i32_0 = arith.constant 0 : i32
    %c0_i32_1 = arith.constant 0 : i32
    return %c0_i32, %c0_i32_0 : i32, i32
  }
  func.func @transform_4(%arg0: i32) -> (i32, i32) {
    %c0_i32 = arith.constant 0 : i32
    %c0_i32_0 = arith.constant 0 : i32
    %c0_i32_1 = arith.constant 0 : i32
    return %c0_i32, %c0_i32_0 : i32, i32
  }
  func.func @transform_5(%arg0: i32) -> (i32, i32) {
    %c0_i32 = arith.constant 0 : i32
    %c0_i32_0 = arith.constant 0 : i32
    %c0_i32_1 = arith.constant 0 : i32
    return %c0_i32, %c0_i32_0 : i32, i32
  }
  func.func @transform_6(%arg0: i32) -> (i32, i32, i32) {
    %c0_i32 = arith.constant 0 : i32
    %c0_i32_0 = arith.constant 0 : i32
    %c0_i32_1 = arith.constant 0 : i32
    return %arg0, %c0_i32, %c0_i32_0 : i32, i32, i32
  }
}

</mosaic_0001>

<llo_original>
// kernel: tpu_custom_call.1
$region0: #{tpu_custom_call.1}
  #allocation0 [shape = 'u32[]', space=smem, size = 0x4, offset = 0x4, fixed_abs, tag = 'smem constant byte address 0x4 - core index']
  #allocation1 [shape = 'u32[144,128]{1,0:T(1,128)}', space=vmem, size = 0x12000, scoped, tag = 'internal scratch']
  %s0 = inlined_call_operand.vmem [shape: f32[2,32,256], index: 0, kind: input, shape index: {}]
  %s1 = inlined_call_operand.vmem [shape: f32[80,32], index: 1, kind: input, shape index: {}]
  %s2 = inlined_call_operand.vmem [shape: f32[80,1], index: 2, kind: input, shape index: {}]
  %s3 = inlined_call_operand.vmem [shape: f32[32,32], index: 3, kind: input, shape index: {}]
  %s4 = inlined_call_operand.vmem [shape: f32[32,1], index: 4, kind: input, shape index: {}]
  %s5 = inlined_call_operand.hbm [shape: f32[256,256], index: 5, kind: input, shape index: {}]
  %s6 = inlined_call_operand.hbm [shape: f32[2,32,256], index: 6, kind: output, shape index: {}]
  %s7 = sld [smem:[#allocation0]]
  $region38: #{tpu_custom_call.1} parent=0
    _
  %s9 = ssub.s32 1, %s7
  %s10 = scalar_select 0, %s9, %s7
  $region1: #{tpu_custom_call.1} parent=0
    #allocation2 [shape = 'u8[262144]{0}', space=vmem, size = 0x40000, scoped, tag = 'input window, operand 5, single buffered']
    #allocation3 [shape = 's32[1]{0}', space=sflag, size = 0x4, scoped, tag = 'scoped memory for tpu_custom_call.1']
    #allocation4 [shape = 's32[1]{0}', space=sflag, size = 0x4, scoped, tag = 'scoped memory for tpu_custom_call.1']
    #allocation5 [shape = 'u8[65536]{0}', space=vmem, size = 0x10000, scoped, tag = 'output window, operand 0, single buffered']
    %11 = vsyncpa [#allocation3], 0
    %12 = vsyncpa [#allocation4], 0
    // Predicated region
    $region2: #{tpu_custom_call.1} parent=1 // pred_check
      _
    $region3: #{tpu_custom_call.1} parent=1 // pred_check_branch
      %14 = sbr.rel (0) target = $region5
    $region4: #{tpu_custom_call.1} parent=1 // pred_region
      _
    $region5: #{tpu_custom_call.1} parent=1 // pred_fallthru
      _
    // Predicated region
    $region6: #{tpu_custom_call.1} parent=1 // pred_check
      _
    $region7: #{tpu_custom_call.1} parent=1 // pred_check_branch
      %16 = sbr.rel (0) target = $region9
    $region8: #{tpu_custom_call.1} parent=1 // pred_region
      _
    $region9: #{tpu_custom_call.1} parent=1 // pred_fallthru
      _
    // Predicated region
    $region10: #{tpu_custom_call.1} parent=1 // pred_check
      _
    $region11: #{tpu_custom_call.1} parent=1 // pred_check_branch
      %18 = sbr.rel (0) target = $region13
    $region12: #{tpu_custom_call.1} parent=1 // pred_region
      _
    $region13: #{tpu_custom_call.1} parent=1 // pred_fallthru
      _
    // Predicated region
    $region14: #{tpu_custom_call.1} parent=1 // pred_check
      _
    $region15: #{tpu_custom_call.1} parent=1 // pred_check_branch
      %20 = sbr.rel (0) target = $region17
    $region16: #{tpu_custom_call.1} parent=1 // pred_region
      _
    $region17: #{tpu_custom_call.1} parent=1 // pred_fallthru
      _
    // Predicated region
    $region18: #{tpu_custom_call.1} parent=1 // pred_check
      _
    $region19: #{tpu_custom_call.1} parent=1 // pred_check_branch
      %22 = sbr.rel (0) target = $region21
    $region20: #{tpu_custom_call.1} parent=1 // pred_region
      _
    $region21: #{tpu_custom_call.1} parent=1 // pred_fallthru
      _
    // Predicated region
    $region22: #{tpu_custom_call.1} parent=1 // pred_check
      _
    $region23: #{tpu_custom_call.1} parent=1 // pred_check_branch
      %24 = sbr.rel (0) target = $region25
    $region24: #{tpu_custom_call.1} parent=1 // pred_region
      %s26 = ssub.s32 8192, 8192
      %27 = vsyncadd [#allocation3], %s26
      %s28 = sshll.u32 [#allocation2], 4
      %s29 = int_to_ptr.vmem [resolvable:$true] %s28
      %34 = dma.hbm_to_vmem [thread:$0]  %s5, 8192, %s29, [#allocation3], 256, 256, 16
    $region25: #{tpu_custom_call.1} parent=1 // pred_fallthru
      _
    // Predicated region
    $region26: #{tpu_custom_call.1} parent=1 // pred_check
      _
    $region27: #{tpu_custom_call.1} parent=1 // pred_check_branch
      %36 = sbr.rel (0) target = $region29
    $region28: #{tpu_custom_call.1} parent=1 // pred_region
      %37 = dma.done [#allocation3], 8192
    $region29: #{tpu_custom_call.1} parent=1 // pred_fallthru
      _
    %v38 = vld [vmem:[%s1] sm:$0xff]
    %v39 = vld [vmem:[%s1 + $0x8] sm:$0xff]
    %v40 = vld [vmem:[%s1 + $0x10] sm:$0xff]
    %v41 = vld [vmem:[%s1 + $0x18] sm:$0xff]
    %v42 = vld [vmem:[%s1 + $0x20] sm:$0xff]
    %v43 = vld [vmem:[%s1 + $0x28] sm:$0xff]
    %v44 = vld [vmem:[%s1 + $0x30] sm:$0xff]
    %v45 = vld [vmem:[%s1 + $0x38] sm:$0xff]
    %v46 = vld [vmem:[%s1 + $0x40] sm:$0xff]
    %v47 = vld [vmem:[%s1 + $0x48] sm:$0xff]
    %v48 = vld [vmem:[%s2] sm:$0xff]
    %v49 = vld [vmem:[%s2 + $0x8] sm:$0xff]
    %v50 = vld [vmem:[%s2 + $0x10] sm:$0xff]
    %v51 = vld [vmem:[%s2 + $0x18] sm:$0xff]
    %v52 = vld [vmem:[%s2 + $0x20] sm:$0xff]
    %v53 = vld [vmem:[%s2 + $0x28] sm:$0xff]
    %v54 = vld [vmem:[%s2 + $0x30] sm:$0xff]
    %v55 = vld [vmem:[%s2 + $0x38] sm:$0xff]
    %v56 = vld [vmem:[%s2 + $0x40] sm:$0xff]
    %v57 = vld [vmem:[%s2 + $0x48] sm:$0xff]
    %v58 = vld [vmem:[%s3] sm:$0xff]
    %v59 = vld [vmem:[%s3 + $0x8] sm:$0xff]
    %v60 = vld [vmem:[%s3 + $0x10] sm:$0xff]
    %v61 = vld [vmem:[%s3 + $0x18] sm:$0xff]
    %v62 = vld [vmem:[%s4] sm:$0xff]
    %v63 = vld [vmem:[%s4 + $0x8] sm:$0xff]
    %v64 = vld [vmem:[%s4 + $0x10] sm:$0xff]
    %v65 = vld [vmem:[%s4 + $0x18] sm:$0xff]
    %v66 = vld [vmem:[#allocation2] sm:$0xff]
    %v67 = vld [vmem:[#allocation2 + $0x8] sm:$0xff]
    %v68 = vld [vmem:[#allocation2 + $0x10] sm:$0xff]
    %v69 = vld [vmem:[#allocation2 + $0x18] sm:$0xff]
    %v70 = vld [vmem:[#allocation2 + $0x20] sm:$0xff]
    %v71 = vld [vmem:[#allocation2 + $0x28] sm:$0xff]
    %v72 = vld [vmem:[#allocation2 + $0x30] sm:$0xff]
    %v73 = vld [vmem:[#allocation2 + $0x38] sm:$0xff]
    %v74 = vld [vmem:[#allocation2 + $0x40] sm:$0xff]
    %v75 = vld [vmem:[#allocation2 + $0x48] sm:$0xff]
    %v76 = vld [vmem:[#allocation2 + $0x50] sm:$0xff]
    %v77 = vld [vmem:[#allocation2 + $0x58] sm:$0xff]
    %v78 = vld [vmem:[#allocation2 + $0x60] sm:$0xff]
    %v79 = vld [vmem:[#allocation2 + $0x68] sm:$0xff]
    %v80 = vld [vmem:[#allocation2 + $0x70] sm:$0xff]
    %v81 = vld [vmem:[#allocation2 + $0x78] sm:$0xff]
    %v82 = vld [vmem:[#allocation2 + $0x80] sm:$0xff]
    %v83 = vld [vmem:[#allocation2 + $0x88] sm:$0xff]
    %v84 = vld [vmem:[#allocation2 + $0x90] sm:$0xff]
    %v85 = vld [vmem:[#allocation2 + $0x98] sm:$0xff]
    %v86 = vld [vmem:[#allocation2 + $0xa0] sm:$0xff]
    %v87 = vld [vmem:[#allocation2 + $0xa8] sm:$0xff]
    %v88 = vld [vmem:[#allocation2 + $0xb0] sm:$0xff]
    %v89 = vld [vmem:[#allocation2 + $0xb8] sm:$0xff]
    %v90 = vld [vmem:[#allocation2 + $0xc0] sm:$0xff]
    %v91 = vld [vmem:[#allocation2 + $0xc8] sm:$0xff]
    %v92 = vld [vmem:[#allocation2 + $0xd0] sm:$0xff]
    %v93 = vld [vmem:[#allocation2 + $0xd8] sm:$0xff]
    %v94 = vld [vmem:[#allocation2 + $0xe0] sm:$0xff]
    %v95 = vld [vmem:[#allocation2 + $0xe8] sm:$0xff]
    %v96 = vld [vmem:[#allocation2 + $0xf0] sm:$0xff]
    %v97 = vld [vmem:[#allocation2 + $0xf8] sm:$0xff]
    %v98 = vld [vmem:[#allocation2 + $0x100] sm:$0xff]
    %v99 = vld [vmem:[#allocation2 + $0x108] sm:$0xff]
    %v100 = vld [vmem:[#allocation2 + $0x110] sm:$0xff]
    %v101 = vld [vmem:[#allocation2 + $0x118] sm:$0xff]
    %v102 = vld [vmem:[#allocation2 + $0x120] sm:$0xff]
    %v103 = vld [vmem:[#allocation2 + $0x128] sm:$0xff]
    %v104 = vld [vmem:[#allocation2 + $0x130] sm:$0xff]
    %v105 = vld [vmem:[#allocation2 + $0x138] sm:$0xff]
    %v106 = vld [vmem:[#allocation2 + $0x140] sm:$0xff]
    %v107 = vld [vmem:[#allocation2 + $0x148] sm:$0xff]
    %v108 = vld [vmem:[#allocation2 + $0x150] sm:$0xff]
    %v109 = vld [vmem:[#allocation2 + $0x158] sm:$0xff]
    %v110 = vld [vmem:[#allocation2 + $0x160] sm:$0xff]
    %v111 = vld [vmem:[#allocation2 + $0x168] sm:$0xff]
    %v112 = vld [vmem:[#allocation2 + $0x170] sm:$0xff]
    %v113 = vld [vmem:[#allocation2 + $0x178] sm:$0xff]
    %v114 = vld [vmem:[#allocation2 + $0x180] sm:$0xff]
    %v115 = vld [vmem:[#allocation2 + $0x188] sm:$0xff]
    %v116 = vld [vmem:[#allocation2 + $0x190] sm:$0xff]
    %v117 = vld [vmem:[#allocation2 + $0x198] sm:$0xff]
    %v118 = vld [vmem:[#allocation2 + $0x1a0] sm:$0xff]
    %v119 = vld [vmem:[#allocation2 + $0x1a8] sm:$0xff]
    %v120 = vld [vmem:[#allocation2 + $0x1b0] sm:$0xff]
    %v121 = vld [vmem:[#allocation2 + $0x1b8] sm:$0xff]
    %v122 = vld [vmem:[#allocation2 + $0x1c0] sm:$0xff]
    %v123 = vld [vmem:[#allocation2 + $0x1c8] sm:$0xff]
    %v124 = vld [vmem:[#allocation2 + $0x1d0] sm:$0xff]
    %v125 = vld [vmem:[#allocation2 + $0x1d8] sm:$0xff]
    %v126 = vld [vmem:[#allocation2 + $0x1e0] sm:$0xff]
    %v127 = vld [vmem:[#allocation2 + $0x1e8] sm:$0xff]
    %v128 = vld [vmem:[#allocation2 + $0x1f0] sm:$0xff]
    %v129 = vld [vmem:[#allocation2 + $0x1f8] sm:$0xff]
    %v130 = vld [vmem:[%s0] sm:$0xff]
    %v131 = vld [vmem:[%s0 + $0x8] sm:$0xff]
    %v132 = vld [vmem:[%s0 + $0x10] sm:$0xff]
    %v133 = vld [vmem:[%s0 + $0x18] sm:$0xff]
    %v134 = vld [vmem:[%s0 + $0x20] sm:$0xff]
    %v135 = vld [vmem:[%s0 + $0x28] sm:$0xff]
    %v136 = vld [vmem:[%s0 + $0x30] sm:$0xff]
    %v137 = vld [vmem:[%s0 + $0x38] sm:$0xff]
    %139 = vset.pattern.permute.xlu0 0
    %140 = vperm.xlu0 %139, %v48
    %v141 = vpop.permute.xlu0 %140
    %144 = vset.pattern.permute.xlu0 0
    %145 = vperm.xlu0 %144, %v49
    %v146 = vpop.permute.xlu0 %145
    %149 = vset.pattern.permute.xlu0 0
    %150 = vperm.xlu0 %149, %v50
    %v151 = vpop.permute.xlu0 %150
    %154 = vset.pattern.permute.xlu0 0
    %155 = vperm.xlu0 %154, %v51
    %v156 = vpop.permute.xlu0 %155
    %159 = vset.pattern.permute.xlu0 0
    %160 = vperm.xlu0 %159, %v52
    %v161 = vpop.permute.xlu0 %160
    %164 = vset.pattern.permute.xlu0 0
    %165 = vperm.xlu0 %164, %v53
    %v166 = vpop.permute.xlu0 %165
    %169 = vset.pattern.permute.xlu0 0
    %170 = vperm.xlu0 %169, %v54
    %v171 = vpop.permute.xlu0 %170
    %174 = vset.pattern.permute.xlu0 0
    %175 = vperm.xlu0 %174, %v55
    %v176 = vpop.permute.xlu0 %175
    %179 = vset.pattern.permute.xlu0 0
    %180 = vperm.xlu0 %179, %v56
    %v181 = vpop.permute.xlu0 %180
    %184 = vset.pattern.permute.xlu0 0
    %185 = vperm.xlu0 %184, %v57
    %v186 = vpop.permute.xlu0 %185
    %vm188 = vcmask 261120
    %v190 = vsel %vm188, %v38, 0
    %v193 = vsel %vm188, %v39, 0
    %v196 = vsel %vm188, %v40, 0
    %v199 = vsel %vm188, %v41, 0
    %v202 = vsel %vm188, %v42, 0
    %v205 = vsel %vm188, %v43, 0
    %v208 = vsel %vm188, %v44, 0
    %v211 = vsel %vm188, %v45, 0
    %v214 = vsel %vm188, %v46, 0
    %v217 = vsel %vm188, %v47, 0
    %219 = vmatprep.subr.mxu0 %v131
    %220 = vmatpush1.msra.mxu0 %v130
    %221 = vmatprep.subr.mxu0 %v133
    %222 = vmatpush1.msra.mxu0 %v132
    %223 = vmatprep.subr.mxu0 %v135
    %224 = vmatpush1.msra.mxu0 %v134
    %225 = vmatprep.subr.mxu0 %v137
    %226 = vmatpush1.msra.mxu0 %v136
    %227 = vmatprep.subr.mxu0 0.0
    %228 = vmatpush1.msra.mxu0 0.0
    %229 = vmatprep.subr.mxu0 0.0
    %230 = vmatpush1.msra.mxu0 0.0
    %231 = vmatprep.subr.mxu0 0.0
    %232 = vmatpush1.msra.mxu0 0.0
    %233 = vmatprep.subr.mxu0 0.0
    %234 = vmatpush1.msra.mxu0 0.0
    %235 = vmatprep.subr.mxu0 0.0
    %236 = vmatpush1.msra.mxu0 0.0
    %237 = vmatprep.subr.mxu0 0.0
    %238 = vmatpush1.msra.mxu0 0.0
    %239 = vmatprep.subr.mxu0 0.0
    %240 = vmatpush1.msra.mxu0 0.0
    %241 = vmatprep.subr.mxu0 0.0
    %242 = vmatpush1.msra.mxu0 0.0
    %243 = vmatprep.subr.mxu0 0.0
    %244 = vmatpush1.msra.mxu0 0.0
    %245 = vmatprep.subr.mxu0 0.0
    %246 = vmatpush1.msra.mxu0 0.0
    %247 = vmatprep.subr.mxu0 0.0
    %248 = vmatpush1.msra.mxu0 0.0
    %249 = vmatprep.subr.mxu0 0.0
    %250 = vmatpush1.msra.mxu0 0.0
    %251 = vmatprep.subr.mxu0 0.0
    %252 = vmatpush1.msra.mxu0 0.0
    %253 = vmatprep.subr.mxu0 0.0
    %254 = vmatpush1.msra.mxu0 0.0
    %255 = vmatprep.subr.mxu0 0.0
    %256 = vmatpush1.msra.mxu0 0.0
    %257 = vmatprep.subr.mxu0 0.0
    %258 = vmatpush1.msra.mxu0 0.0
    %259 = vmatprep.subr.mxu0 0.0
    %260 = vmatpush1.msra.mxu0 0.0
    %261 = vmatprep.subr.mxu0 0.0
    %262 = vmatpush1.msra.mxu0 0.0
    %263 = vmatprep.subr.mxu0 0.0
    %264 = vmatpush1.msra.mxu0 0.0
    %265 = vmatprep.subr.mxu0 0.0
    %266 = vmatpush1.msra.mxu0 0.0
    %267 = vmatprep.subr.mxu0 0.0
    %268 = vmatpush1.msra.mxu0 0.0
    %269 = vmatprep.subr.mxu0 0.0
    %270 = vmatpush1.msra.mxu0 0.0
    %271 = vmatprep.subr.mxu0 0.0
    %272 = vmatpush1.msra.mxu0 0.0
    %273 = vmatprep.subr.mxu0 0.0
    %274 = vmatpush1.msra.mxu0 0.0
    %275 = vmatprep.subr.mxu0 0.0
    %276 = vmatpush1.msra.mxu0 0.0
    %277 = vmatprep.subr.mxu0 0.0
    %278 = vmatpush1.msra.mxu0 0.0
    %279 = vmatprep.subr.mxu0 0.0
    %280 = vmatpush1.msra.mxu0 0.0
    %281 = vmatprep.subr.mxu0 0.0
    %282 = vmatpush1.msra.mxu0 0.0
    %283 = vmatprep.mubr.f32.mxu0 0.0
    %284 = vmatmul.mubr.f32.gmra.mrb[0].mxu0 %v190
    %v285 = vpop.f32.mrb[0].mxu0
    %v286 = vadd.f32 %v141, %v285
    %v287 = vpop.f32.mrb[0].mxu0
    %v288 = vadd.f32 %v141, %v287
    %289 = vmatprep.mubr.f32.mxu0 0.0
    %290 = vmatmul.mubr.f32.gmra.mrb[0].mxu0 %v193
    %v291 = vpop.f32.mrb[0].mxu0
    %v292 = vadd.f32 %v146, %v291
    %v293 = vpop.f32.mrb[0].mxu0
    %v294 = vadd.f32 %v146, %v293
    %295 = vmatprep.mubr.f32.mxu0 0.0
    %296 = vmatmul.mubr.f32.gmra.mrb[0].mxu0 %v196
    %v297 = vpop.f32.mrb[0].mxu0
    %v298 = vadd.f32 %v151, %v297
    %v299 = vpop.f32.mrb[0].mxu0
    %v300 = vadd.f32 %v151, %v299
    %301 = vmatprep.mubr.f32.mxu0 0.0
    %302 = vmatmul.mubr.f32.gmra.mrb[0].mxu0 %v199
    %v303 = vpop.f32.mrb[0].mxu0
    %v304 = vadd.f32 %v156, %v303
    %v305 = vpop.f32.mrb[0].mxu0
    %v306 = vadd.f32 %v156, %v305
    %307 = vmatprep.mubr.f32.mxu0 0.0
    %308 = vmatmul.mubr.f32.gmra.mrb[0].mxu0 %v202
    %v309 = vpop.f32.mrb[0].mxu0
    %v310 = vadd.f32 %v161, %v309
    %v311 = vpop.f32.mrb[0].mxu0
    %v312 = vadd.f32 %v161, %v311
    %313 = vmatprep.mubr.f32.mxu0 0.0
    %314 = vmatmul.mubr.f32.gmra.mrb[0].mxu0 %v205
    %v315 = vpop.f32.mrb[0].mxu0
    %v316 = vadd.f32 %v166, %v315
    %v317 = vpop.f32.mrb[0].mxu0
    %v318 = vadd.f32 %v166, %v317
    %319 = vmatprep.mubr.f32.mxu0 0.0
    %320 = vmatmul.mubr.f32.gmra.mrb[0].mxu0 %v208
    %v321 = vpop.f32.mrb[0].mxu0
    %v322 = vadd.f32 %v171, %v321
    %v323 = vpop.f32.mrb[0].mxu0
    %v324 = vadd.f32 %v171, %v323
    %325 = vmatprep.mubr.f32.mxu0 0.0
    %326 = vmatmul.mubr.f32.gmra.mrb[0].mxu0 %v211
    %v327 = vpop.f32.mrb[0].mxu0
    %v328 = vadd.f32 %v176, %v327
    %v329 = vpop.f32.mrb[0].mxu0
    %v330 = vadd.f32 %v176, %v329
    %331 = vmatprep.mubr.f32.mxu0 0.0
    %332 = vmatmul.mubr.f32.gmra.mrb[0].mxu0 %v214
    %v333 = vpop.f32.mrb[0].mxu0
    %v334 = vadd.f32 %v181, %v333
    %v335 = vpop.f32.mrb[0].mxu0
    %v336 = vadd.f32 %v181, %v335
    %337 = vmatprep.mubr.f32.mxu0 0.0
    %338 = vmatmul.mubr.f32.gmra.mrb[0].mxu0 %v217
    %v339 = vpop.f32.mrb[0].mxu0
    %v340 = vadd.f32 %v186, %v339
    %v341 = vpop.f32.mrb[0].mxu0
    %v342 = vadd.f32 %v186, %v341
    %343 = vdwg.mxu0
    %344 = vmatprep.subr.mxu0 %v67
    %345 = vmatpush1.msra.mxu0 %v66
    %346 = vmatprep.subr.mxu0 %v69
    %347 = vmatpush1.msra.mxu0 %v68
    %348 = vmatprep.subr.mxu0 %v71
    %349 = vmatpush1.msra.mxu0 %v70
    %350 = vmatprep.subr.mxu0 %v73
    %351 = vmatpush1.msra.mxu0 %v72
    %352 = vmatprep.subr.mxu0 %v75
    %353 = vmatpush1.msra.mxu0 %v74
    %354 = vmatprep.subr.mxu0 %v77
    %355 = vmatpush1.msra.mxu0 %v76
    %356 = vmatprep.subr.mxu0 %v79
    %357 = vmatpush1.msra.mxu0 %v78
    %358 = vmatprep.subr.mxu0 %v81
    %359 = vmatpush1.msra.mxu0 %v80
    %360 = vmatprep.subr.mxu0 %v83
    %361 = vmatpush1.msra.mxu0 %v82
    %362 = vmatprep.subr.mxu0 %v85
    %363 = vmatpush1.msra.mxu0 %v84
    %364 = vmatprep.subr.mxu0 %v87
    %365 = vmatpush1.msra.mxu0 %v86
    %366 = vmatprep.subr.mxu0 %v89
    %367 = vmatpush1.msra.mxu0 %v88
    %368 = vmatprep.subr.mxu0 %v91
    %369 = vmatpush1.msra.mxu0 %v90
    %370 = vmatprep.subr.mxu0 %v93
    %371 = vmatpush1.msra.mxu0 %v92
    %372 = vmatprep.subr.mxu0 %v95
    %373 = vmatpush1.msra.mxu0 %v94
    %374 = vmatprep.subr.mxu0 %v97
    %375 = vmatpush1.msra.mxu0 %v96
    %376 = vmatprep.subr.mxu0 %v99
    %377 = vmatpush1.msra.mxu0 %v98
    %378 = vmatprep.subr.mxu0 %v101
    %379 = vmatpush1.msra.mxu0 %v100
    %380 = vmatprep.subr.mxu0 %v103
    %381 = vmatpush1.msra.mxu0 %v102
    %382 = vmatprep.subr.mxu0 %v105
    %383 = vmatpush1.msra.mxu0 %v104
    %384 = vmatprep.subr.mxu0 %v107
    %385 = vmatpush1.msra.mxu0 %v106
    %386 = vmatprep.subr.mxu0 %v109
    %387 = vmatpush1.msra.mxu0 %v108
    %388 = vmatprep.subr.mxu0 %v111
    %389 = vmatpush1.msra.mxu0 %v110
    %390 = vmatprep.subr.mxu0 %v113
    %391 = vmatpush1.msra.mxu0 %v112
    %392 = vmatprep.subr.mxu0 %v115
    %393 = vmatpush1.msra.mxu0 %v114
    %394 = vmatprep.subr.mxu0 %v117
    %395 = vmatpush1.msra.mxu0 %v116
    %396 = vmatprep.subr.mxu0 %v119
    %397 = vmatpush1.msra.mxu0 %v118
    %398 = vmatprep.subr.mxu0 %v121
    %399 = vmatpush1.msra.mxu0 %v120
    %400 = vmatprep.subr.mxu0 %v123
    %401 = vmatpush1.msra.mxu0 %v122
    %402 = vmatprep.subr.mxu0 %v125
    %403 = vmatpush1.msra.mxu0 %v124
    %404 = vmatprep.subr.mxu0 %v127
    %405 = vmatpush1.msra.mxu0 %v126
    %406 = vmatprep.subr.mxu0 %v129
    %407 = vmatpush1.msra.mxu0 %v128
    %408 = vmatprep.mubr.f32.mxu0 %v342
    %409 = vmatmul.mubr.f32.gmra.mrb[0].mxu0 %v340
    %v410 = vpop.f32.mrb[0].mxu0
    %v411 = vadd.f32 0.0, %v410
    %v412 = vpop.f32.mrb[0].mxu0
    %v413 = vadd.f32 0.0, %v412
    %414 = vdwg.mxu0
    %v415 = vmul.f32 %v411, 0.0625
    %v416 = vmul.f32 %v413, 0.0625
    %v417 = vsub.f32 %v340, %v415
    %v418 = vsub.f32 %v342, %v416
    %v419 = vmul.f32 %v417, 1.442695
    %v420 = vpow.pop %v419
    %v421 = vmul.f32 %v418, 1.442695
    %v422 = vpow.pop %v421
    %v423 = vlaneseq
    %v424 = vshrl.u32 %v423, 7
    %v425 = vsub.s32 0, %v424
    %v426 = vrot.slane %v420, %v425
    %v427 = vlaneseq
    %v428 = vshrl.u32 %v427, 7
    %v429 = vsub.s32 0, %v428
    %v430 = vrot.slane %v422, %v429
    %v431 = vmul.f32 %v286, %v426
    %v432 = vmul.f32 %v288, %v430
    %v433 = vmul.f32 %v292, %v426
    %v434 = vmul.f32 %v294, %v430
    %v435 = vmul.f32 %v298, %v426
    %v436 = vmul.f32 %v300, %v430
    %v437 = vmul.f32 %v304, %v426
    %v438 = vmul.f32 %v306, %v430
    %v439 = vmul.f32 %v310, %v426
    %v440 = vmul.f32 %v312, %v430
    %441 = vmatprep.subr.mxu0 %v67
    %442 = vmatpush1.msra.mxu0 %v66
    %443 = vmatprep.subr.mxu0 %v69
    %444 = vmatpush1.msra.mxu0 %v68
    %445 = vmatprep.subr.mxu0 %v71
    %446 = vmatpush1.msra.mxu0 %v70
    %447 = vmatprep.subr.mxu0 %v73
    %448 = vmatpush1.msra.mxu0 %v72
    %449 = vmatprep.subr.mxu0 %v75
    %450 = vmatpush1.msra.mxu0 %v74
    %451 = vmatprep.subr.mxu0 %v77
    %452 = vmatpush1.msra.mxu0 %v76
    %453 = vmatprep.subr.mxu0 %v79
    %454 = vmatpush1.msra.mxu0 %v78
    %455 = vmatprep.subr.mxu0 %v81
    %456 = vmatpush1.msra.mxu0 %v80
    %457 = vmatprep.subr.mxu0 %v83
    %458 = vmatpush1.msra.mxu0 %v82
    %459 = vmatprep.subr.mxu0 %v85
    %460 = vmatpush1.msra.mxu0 %v84
    %461 = vmatprep.subr.mxu0 %v87
    %462 = vmatpush1.msra.mxu0 %v86
    %463 = vmatprep.subr.mxu0 %v89
    %464 = vmatpush1.msra.mxu0 %v88
    %465 = vmatprep.subr.mxu0 %v91
    %466 = vmatpush1.msra.mxu0 %v90
    %467 = vmatprep.subr.mxu0 %v93
    %468 = vmatpush1.msra.mxu0 %v92
    %469 = vmatprep.subr.mxu0 %v95
    %470 = vmatpush1.msra.mxu0 %v94
    %471 = vmatprep.subr.mxu0 %v97
    %472 = vmatpush1.msra.mxu0 %v96
    %473 = vmatprep.subr.mxu0 %v99
    %474 = vmatpush1.msra.mxu0 %v98
    %475 = vmatprep.subr.mxu0 %v101
    %476 = vmatpush1.msra.mxu0 %v100
    %477 = vmatprep.subr.mxu0 %v103
    %478 = vmatpush1.msra.mxu0 %v102
    %479 = vmatprep.subr.mxu0 %v105
    %480 = vmatpush1.msra.mxu0 %v104
    %481 = vmatprep.subr.mxu0 %v107
    %482 = vmatpush1.msra.mxu0 %v106
    %483 = vmatprep.subr.mxu0 %v109
    %484 = vmatpush1.msra.mxu0 %v108
    %485 = vmatprep.subr.mxu0 %v111
    %486 = vmatpush1.msra.mxu0 %v110
    %487 = vmatprep.subr.mxu0 %v113
    %488 = vmatpush1.msra.mxu0 %v112
    %489 = vmatprep.subr.mxu0 %v115
    %490 = vmatpush1.msra.mxu0 %v114
    %491 = vmatprep.subr.mxu0 %v117
    %492 = vmatpush1.msra.mxu0 %v116
    %493 = vmatprep.subr.mxu0 %v119
    %494 = vmatpush1.msra.mxu0 %v118
    %495 = vmatprep.subr.mxu0 %v121
    %496 = vmatpush1.msra.mxu0 %v120
    %497 = vmatprep.subr.mxu0 %v123
    %498 = vmatpush1.msra.mxu0 %v122
    %499 = vmatprep.subr.mxu0 %v125
    %500 = vmatpush1.msra.mxu0 %v124
    %501 = vmatprep.subr.mxu0 %v127
    %502 = vmatpush1.msra.mxu0 %v126
    %503 = vmatprep.subr.mxu0 %v129
    %504 = vmatpush1.msra.mxu0 %v128
    %505 = vmatprep.mubr.f32.mxu0 %v432
    %506 = vmatmul.mubr.f32.gmra.mrb[0].mxu0 %v431
    %v507 = vpop.f32.mrb[0].mxu0
    %v508 = vadd.f32 0.0, %v507
    %v509 = vpop.f32.mrb[0].mxu0
    %v510 = vadd.f32 0.0, %v509
    %511 = vmatprep.mubr.f32.mxu0 %v434
    %512 = vmatmul.mubr.f32.gmra.mrb[0].mxu0 %v433
    %v513 = vpop.f32.mrb[0].mxu0
    %v514 = vadd.f32 0.0, %v513
    %v515 = vpop.f32.mrb[0].mxu0
    %v516 = vadd.f32 0.0, %v515
    %517 = vmatprep.mubr.f32.mxu0 %v436
    %518 = vmatmul.mubr.f32.gmra.mrb[0].mxu0 %v435
    %v519 = vpop.f32.mrb[0].mxu0
    %v520 = vadd.f32 0.0, %v519
    %v521 = vpop.f32.mrb[0].mxu0
    %v522 = vadd.f32 0.0, %v521
    %523 = vmatprep.mubr.f32.mxu0 %v438
    %524 = vmatmul.mubr.f32.gmra.mrb[0].mxu0 %v437
    %v525 = vpop.f32.mrb[0].mxu0
    %v526 = vadd.f32 0.0, %v525
    %v527 = vpop.f32.mrb[0].mxu0
    %v528 = vadd.f32 0.0, %v527
    %529 = vmatprep.mubr.f32.mxu0 %v440
    %530 = vmatmul.mubr.f32.gmra.mrb[0].mxu0 %v439
    %v531 = vpop.f32.mrb[0].mxu0
    %v532 = vadd.f32 0.0, %v531
    %v533 = vpop.f32.mrb[0].mxu0
    %v534 = vadd.f32 0.0, %v533
    %535 = vdwg.mxu0
    %v536 = vrcp.pop %v532
    %v537 = vmul.f32 1.0, %v536
    %v538 = vrcp.pop %v534
    %v539 = vmul.f32 1.0, %v538
    %v540 = vlaneseq
    %v541 = vshrl.u32 %v540, 7
    %v542 = vsub.s32 0, %v541
    %v543 = vrot.slane %v537, %v542
    %v544 = vlaneseq
    %v545 = vshrl.u32 %v544, 7
    %v546 = vsub.s32 0, %v545
    %v547 = vrot.slane %v539, %v546
    %v548 = vmul.f32 %v508, %v543
    %v549 = vmul.f32 %v510, %v547
    %v550 = vmul.f32 %v514, %v543
    %v551 = vmul.f32 %v516, %v547
    %v552 = vmul.f32 %v520, %v543
    %v553 = vmul.f32 %v522, %v547
    %v554 = vmul.f32 %v526, %v543
    %v555 = vmul.f32 %v528, %v547
    %v556 = vmax.f32 %v316, 0.0
    %v557 = vmax.f32 %v318, 0.0
    %v558 = vmax.f32 %v322, 0.0
    %v559 = vmax.f32 %v324, 0.0
    %v560 = vmax.f32 %v328, 0.0
    %v561 = vmax.f32 %v330, 0.0
    %v562 = vmax.f32 %v334, 0.0
    %v563 = vmax.f32 %v336, 0.0
    %v564 = vmul.f32 %v556, %v548
    %v565 = vmul.f32 %v557, %v549
    %v566 = vmul.f32 %v558, %v550
    %v567 = vmul.f32 %v559, %v551
    %v568 = vmul.f32 %v560, %v552
    %v569 = vmul.f32 %v561, %v553
    %v570 = vmul.f32 %v562, %v554
    %v571 = vmul.f32 %v563, %v555
    %573 = vset.pattern.permute.xlu0 0
    %574 = vperm.xlu0 %573, %v62
    %v575 = vpop.permute.xlu0 %574
    %578 = vset.pattern.permute.xlu0 0
    %579 = vperm.xlu0 %578, %v63
    %v580 = vpop.permute.xlu0 %579
    %583 = vset.pattern.permute.xlu0 0
    %584 = vperm.xlu0 %583, %v64
    %v585 = vpop.permute.xlu0 %584
    %588 = vset.pattern.permute.xlu0 0
    %589 = vperm.xlu0 %588, %v65
    %v590 = vpop.permute.xlu0 %589
    %v593 = vsel %vm188, %v58, 0
    %v596 = vsel %vm188, %v59, 0
    %v599 = vsel %vm188, %v60, 0
    %v602 = vsel %vm188, %v61, 0
    %604 = vmatprep.subr.mxu0 %v565
    %605 = vmatpush1.msra.mxu0 %v564
    %606 = vmatprep.subr.mxu0 %v567
    %607 = vmatpush1.msra.mxu0 %v566
    %608 = vmatprep.subr.mxu0 %v569
    %609 = vmatpush1.msra.mxu0 %v568
    %610 = vmatprep.subr.mxu0 %v571
    %611 = vmatpush1.msra.mxu0 %v570
    %612 = vmatprep.subr.mxu0 0.0
    %613 = vmatpush1.msra.mxu0 0.0
    %614 = vmatprep.subr.mxu0 0.0
    %615 = vmatpush1.msra.mxu0 0.0
    %616 = vmatprep.subr.mxu0 0.0
    %617 = vmatpush1.msra.mxu0 0.0
    %618 = vmatprep.subr.mxu0 0.0
    %619 = vmatpush1.msra.mxu0 0.0
    %620 = vmatprep.subr.mxu0 0.0
    %621 = vmatpush1.msra.mxu0 0.0
    %622 = vmatprep.subr.mxu0 0.0
    %623 = vmatpush1.msra.mxu0 0.0
    %624 = vmatprep.subr.mxu0 0.0
    %625 = vmatpush1.msra.mxu0 0.0
    %626 = vmatprep.subr.mxu0 0.0
    %627 = vmatpush1.msra.mxu0 0.0
    %628 = vmatprep.subr.mxu0 0.0
    %629 = vmatpush1.msra.mxu0 0.0
    %630 = vmatprep.subr.mxu0 0.0
    %631 = vmatpush1.msra.mxu0 0.0
    %632 = vmatprep.subr.mxu0 0.0
    %633 = vmatpush1.msra.mxu0 0.0
    %634 = vmatprep.subr.mxu0 0.0
    %635 = vmatpush1.msra.mxu0 0.0
    %636 = vmatprep.subr.mxu0 0.0
    %637 = vmatpush1.msra.mxu0 0.0
    %638 = vmatprep.subr.mxu0 0.0
    %639 = vmatpush1.msra.mxu0 0.0
    %640 = vmatprep.subr.mxu0 0.0
    %641 = vmatpush1.msra.mxu0 0.0
    %642 = vmatprep.subr.mxu0 0.0
    %643 = vmatpush1.msra.mxu0 0.0
    %644 = vmatprep.subr.mxu0 0.0
    %645 = vmatpush1.msra.mxu0 0.0
    %646 = vmatprep.subr.mxu0 0.0
    %647 = vmatpush1.msra.mxu0 0.0
    %648 = vmatprep.subr.mxu0 0.0
    %649 = vmatpush1.msra.mxu0 0.0
    %650 = vmatprep.subr.mxu0 0.0
    %651 = vmatpush1.msra.mxu0 0.0
    %652 = vmatprep.subr.mxu0 0.0
    %653 = vmatpush1.msra.mxu0 0.0
    %654 = vmatprep.subr.mxu0 0.0
    %655 = vmatpush1.msra.mxu0 0.0
    %656 = vmatprep.subr.mxu0 0.0
    %657 = vmatpush1.msra.mxu0 0.0
    %658 = vmatprep.subr.mxu0 0.0
    %659 = vmatpush1.msra.mxu0 0.0
    %660 = vmatprep.subr.mxu0 0.0
    %661 = vmatpush1.msra.mxu0 0.0
    %662 = vmatprep.subr.mxu0 0.0
    %663 = vmatpush1.msra.mxu0 0.0
    %664 = vmatprep.subr.mxu0 0.0
    %665 = vmatpush1.msra.mxu0 0.0
    %666 = vmatprep.subr.mxu0 0.0
    %667 = vmatpush1.msra.mxu0 0.0
    %668 = vmatprep.mubr.f32.mxu0 0.0
    %669 = vmatmul.mubr.f32.gmra.mrb[0].mxu0 %v593
    %v670 = vpop.f32.mrb[0].mxu0
    %v671 = vadd.f32 %v575, %v670
    %v672 = vpop.f32.mrb[0].mxu0
    %v673 = vadd.f32 %v575, %v672
    %674 = vmatprep.mubr.f32.mxu0 0.0
    %675 = vmatmul.mubr.f32.gmra.mrb[0].mxu0 %v596
    %v676 = vpop.f32.mrb[0].mxu0
    %v677 = vadd.f32 %v580, %v676
    %v678 = vpop.f32.mrb[0].mxu0
    %v679 = vadd.f32 %v580, %v678
    %680 = vmatprep.mubr.f32.mxu0 0.0
    %681 = vmatmul.mubr.f32.gmra.mrb[0].mxu0 %v599
    %v682 = vpop.f32.mrb[0].mxu0
    %v683 = vadd.f32 %v585, %v682
    %v684 = vpop.f32.mrb[0].mxu0
    %v685 = vadd.f32 %v585, %v684
    %686 = vmatprep.mubr.f32.mxu0 0.0
    %687 = vmatmul.mubr.f32.gmra.mrb[0].mxu0 %v602
    %v688 = vpop.f32.mrb[0].mxu0
    %v689 = vadd.f32 %v590, %v688
    %v690 = vpop.f32.mrb[0].mxu0
    %v691 = vadd.f32 %v590, %v690
    %692 = vdwg.mxu0
    %693 = vst [vmem:[#allocation5] sm:$0xff] %v671
    %694 = vst [vmem:[#allocation5 + $0x8] sm:$0xff] %v673
    %695 = vst [vmem:[#allocation5 + $0x10] sm:$0xff] %v677
    %696 = vst [vmem:[#allocation5 + $0x18] sm:$0xff] %v679
    %697 = vst [vmem:[#allocation5 + $0x20] sm:$0xff] %v683
    %698 = vst [vmem:[#allocation5 + $0x28] sm:$0xff] %v685
    %699 = vst [vmem:[#allocation5 + $0x30] sm:$0xff] %v689
    %700 = vst [vmem:[#allocation5 + $0x38] sm:$0xff] %v691
    %s701 = scalar_lea.vmem %s0, 64
    %v702 = vld [vmem:[%s701] sm:$0xff]
    %v703 = vld [vmem:[%s701 + $0x8] sm:$0xff]
    %v704 = vld [vmem:[%s701 + $0x10] sm:$0xff]
    %v705 = vld [vmem:[%s701 + $0x18] sm:$0xff]
    %v706 = vld [vmem:[%s701 + $0x20] sm:$0xff]
    %v707 = vld [vmem:[%s701 + $0x28] sm:$0xff]
    %v708 = vld [vmem:[%s701 + $0x30] sm:$0xff]
    %v709 = vld [vmem:[%s701 + $0x38] sm:$0xff]
    %710 = vmatprep.subr.mxu0 %v703
    %711 = vmatpush1.msra.mxu0 %v702
    %712 = vmatprep.subr.mxu0 %v705
    %713 = vmatpush1.msra.mxu0 %v704
    %714 = vmatprep.subr.mxu0 %v707
    %715 = vmatpush1.msra.mxu0 %v706
    %716 = vmatprep.subr.mxu0 %v709
    %717 = vmatpush1.msra.mxu0 %v708
    %718 = vmatprep.subr.mxu0 0.0
    %719 = vmatpush1.msra.mxu0 0.0
    %720 = vmatprep.subr.mxu0 0.0
    %721 = vmatpush1.msra.mxu0 0.0
    %722 = vmatprep.subr.mxu0 0.0
    %723 = vmatpush1.msra.mxu0 0.0
    %724 = vmatprep.subr.mxu0 0.0
    %725 = vmatpush1.msra.mxu0 0.0
    %726 = vmatprep.subr.mxu0 0.0
    %727 = vmatpush1.msra.mxu0 0.0
    %728 = vmatprep.subr.mxu0 0.0
    %729 = vmatpush1.msra.mxu0 0.0
    %730 = vmatprep.subr.mxu0 0.0
    %731 = vmatpush1.msra.mxu0 0.0
    %732 = vmatprep.subr.mxu0 0.0
    %733 = vmatpush1.msra.mxu0 0.0
    %734 = vmatprep.subr.mxu0 0.0
    %735 = vmatpush1.msra.mxu0 0.0
    %736 = vmatprep.subr.mxu0 0.0
    %737 = vmatpush1.msra.mxu0 0.0
    %738 = vmatprep.subr.mxu0 0.0
    %739 = vmatpush1.msra.mxu0 0.0
    %740 = vmatprep.subr.mxu0 0.0
    %741 = vmatpush1.msra.mxu0 0.0
    %742 = vmatprep.subr.mxu0 0.0
    %743 = vmatpush1.msra.mxu0 0.0
    %744 = vmatprep.subr.mxu0 0.0
    %745 = vmatpush1.msra.mxu0 0.0
    %746 = vmatprep.subr.mxu0 0.0
    %747 = vmatpush1.msra.mxu0 0.0
    %748 = vmatprep.subr.mxu0 0.0
    %749 = vmatpush1.msra.mxu0 0.0
    %750 = vmatprep.subr.mxu0 0.0
    %751 = vmatpush1.msra.mxu0 0.0
    %752 = vmatprep.subr.mxu0 0.0
    %753 = vmatpush1.msra.mxu0 0.0
    %754 = vmatprep.subr.mxu0 0.0
    %755 = vmatpush1.msra.mxu0 0.0
    %756 = vmatprep.subr.mxu0 0.0
    %757 = vmatpush1.msra.mxu0 0.0
    %758 = vmatprep.subr.mxu0 0.0
    %759 = vmatpush1.msra.mxu0 0.0
    %760 = vmatprep.subr.mxu0 0.0
    %761 = vmatpush1.msra.mxu0 0.0
    %762 = vmatprep.subr.mxu0 0.0
    %763 = vmatpush1.msra.mxu0 0.0
    %764 = vmatprep.subr.mxu0 0.0
    %765 = vmatpush1.msra.mxu0 0.0
    %766 = vmatprep.subr.mxu0 0.0
    %767 = vmatpush1.msra.mxu0 0.0
    %768 = vmatprep.subr.mxu0 0.0
    %769 = vmatpush1.msra.mxu0 0.0
    %770 = vmatprep.subr.mxu0 0.0
    %771 = vmatpush1.msra.mxu0 0.0
    %772 = vmatprep.subr.mxu0 0.0
    %773 = vmatpush1.msra.mxu0 0.0
    %774 = vmatprep.mubr.f32.mxu0 0.0
    %775 = vmatmul.mubr.f32.gmra.mrb[0].mxu0 %v190
    %v776 = vpop.f32.mrb[0].mxu0
    %v777 = vadd.f32 %v141, %v776
    %v778 = vpop.f32.mrb[0].mxu0
    %v779 = vadd.f32 %v141, %v778
    %780 = vmatprep.mubr.f32.mxu0 0.0
    %781 = vmatmul.mubr.f32.gmra.mrb[0].mxu0 %v193
    %v782 = vpop.f32.mrb[0].mxu0
    %v783 = vadd.f32 %v146, %v782
    %v784 = vpop.f32.mrb[0].mxu0
    %v785 = vadd.f32 %v146, %v784
    %786 = vmatprep.mubr.f32.mxu0 0.0
    %787 = vmatmul.mubr.f32.gmra.mrb[0].mxu0 %v196
    %v788 = vpop.f32.mrb[0].mxu0
    %v789 = vadd.f32 %v151, %v788
    %v790 = vpop.f32.mrb[0].mxu0
    %v791 = vadd.f32 %v151, %v790
    %792 = vmatprep.mubr.f32.mxu0 0.0
    %793 = vmatmul.mubr.f32.gmra.mrb[0].mxu0 %v199
    %v794 = vpop.f32.mrb[0].mxu0
    %v795 = vadd.f32 %v156, %v794
    %v796 = vpop.f32.mrb[0].mxu0
    %v797 = vadd.f32 %v156, %v796
    %798 = vmatprep.mubr.f32.mxu0 0.0
    %799 = vmatmul.mubr.f32.gmra.mrb[0].mxu0 %v202
    %v800 = vpop.f32.mrb[0].mxu0
    %v801 = vadd.f32 %v161, %v800
    %v802 = vpop.f32.mrb[0].mxu0
    %v803 = vadd.f32 %v161, %v802
    %804 = vmatprep.mubr.f32.mxu0 0.0
    %805 = vmatmul.mubr.f32.gmra.mrb[0].mxu0 %v205
    %v806 = vpop.f32.mrb[0].mxu0
    %v807 = vadd.f32 %v166, %v806
    %v808 = vpop.f32.mrb[0].mxu0
    %v809 = vadd.f32 %v166, %v808
    %810 = vmatprep.mubr.f32.mxu0 0.0
    %811 = vmatmul.mubr.f32.gmra.mrb[0].mxu0 %v208
    %v812 = vpop.f32.mrb[0].mxu0
    %v813 = vadd.f32 %v171, %v812
    %v814 = vpop.f32.mrb[0].mxu0
    %v815 = vadd.f32 %v171, %v814
    %816 = vmatprep.mubr.f32.mxu0 0.0
    %817 = vmatmul.mubr.f32.gmra.mrb[0].mxu0 %v211
    %v818 = vpop.f32.mrb[0].mxu0
    %v819 = vadd.f32 %v176, %v818
    %v820 = vpop.f32.mrb[0].mxu0
    %v821 = vadd.f32 %v176, %v820
    %822 = vmatprep.mubr.f32.mxu0 0.0
    %823 = vmatmul.mubr.f32.gmra.mrb[0].mxu0 %v214
    %v824 = vpop.f32.mrb[0].mxu0
    %v825 = vadd.f32 %v181, %v824
    %v826 = vpop.f32.mrb[0].mxu0
    %v827 = vadd.f32 %v181, %v826
    %828 = vmatprep.mubr.f32.mxu0 0.0
    %829 = vmatmul.mubr.f32.gmra.mrb[0].mxu0 %v217
    %v830 = vpop.f32.mrb[0].mxu0
    %v831 = vadd.f32 %v186, %v830
    %v832 = vpop.f32.mrb[0].mxu0
    %v833 = vadd.f32 %v186, %v832
    %834 = vdwg.mxu0
    %835 = vmatprep.subr.mxu0 %v67
    %836 = vmatpush1.msra.mxu0 %v66
    %837 = vmatprep.subr.mxu0 %v69
    %838 = vmatpush1.msra.mxu0 %v68
    %839 = vmatprep.subr.mxu0 %v71
    %840 = vmatpush1.msra.mxu0 %v70
    %841 = vmatprep.subr.mxu0 %v73
    %842 = vmatpush1.msra.mxu0 %v72
    %843 = vmatprep.subr.mxu0 %v75
    %844 = vmatpush1.msra.mxu0 %v74
    %845 = vmatprep.subr.mxu0 %v77
    %846 = vmatpush1.msra.mxu0 %v76
    %847 = vmatprep.subr.mxu0 %v79
    %848 = vmatpush1.msra.mxu0 %v78
    %849 = vmatprep.subr.mxu0 %v81
    %850 = vmatpush1.msra.mxu0 %v80
    %851 = vmatprep.subr.mxu0 %v83
    %852 = vmatpush1.msra.mxu0 %v82
    %853 = vmatprep.subr.mxu0 %v85
    %854 = vmatpush1.msra.mxu0 %v84
    %855 = vmatprep.subr.mxu0 %v87
    %856 = vmatpush1.msra.mxu0 %v86
    %857 = vmatprep.subr.mxu0 %v89
    %858 = vmatpush1.msra.mxu0 %v88
    %859 = vmatprep.subr.mxu0 %v91
    %860 = vmatpush1.msra.mxu0 %v90
    %861 = vmatprep.subr.mxu0 %v93
    %862 = vmatpush1.msra.mxu0 %v92
    %863 = vmatprep.subr.mxu0 %v95
    %864 = vmatpush1.msra.mxu0 %v94
    %865 = vmatprep.subr.mxu0 %v97
    %866 = vmatpush1.msra.mxu0 %v96
    %867 = vmatprep.subr.mxu0 %v99
    %868 = vmatpush1.msra.mxu0 %v98
    %869 = vmatprep.subr.mxu0 %v101
    %870 = vmatpush1.msra.mxu0 %v100
    %871 = vmatprep.subr.mxu0 %v103
    %872 = vmatpush1.msra.mxu0 %v102
    %873 = vmatprep.subr.mxu0 %v105
    %874 = vmatpush1.msra.mxu0 %v104
    %875 = vmatprep.subr.mxu0 %v107
    %876 = vmatpush1.msra.mxu0 %v106
    %877 = vmatprep.subr.mxu0 %v109
    %878 = vmatpush1.msra.mxu0 %v108
    %879 = vmatprep.subr.mxu0 %v111
    %880 = vmatpush1.msra.mxu0 %v110
    %881 = vmatprep.subr.mxu0 %v113
    %882 = vmatpush1.msra.mxu0 %v112
    %883 = vmatprep.subr.mxu0 %v115
    %884 = vmatpush1.msra.mxu0 %v114
    %885 = vmatprep.subr.mxu0 %v117
    %886 = vmatpush1.msra.mxu0 %v116
    %887 = vmatprep.subr.mxu0 %v119
    %888 = vmatpush1.msra.mxu0 %v118
    %889 = vmatprep.subr.mxu0 %v121
    %890 = vmatpush1.msra.mxu0 %v120
    %891 = vmatprep.subr.mxu0 %v123
    %892 = vmatpush1.msra.mxu0 %v122
    %893 = vmatprep.subr.mxu0 %v125
    %894 = vmatpush1.msra.mxu0 %v124
    %895 = vmatprep.subr.mxu0 %v127
    %896 = vmatpush1.msra.mxu0 %v126
    %897 = vmatprep.subr.mxu0 %v129
    %898 = vmatpush1.msra.mxu0 %v128
    %899 = vmatprep.mubr.f32.mxu0 %v833
    %900 = vmatmul.mubr.f32.gmra.mrb[0].mxu0 %v831
    %v901 = vpop.f32.mrb[0].mxu0
    %v902 = vadd.f32 0.0, %v901
    %v903 = vpop.f32.mrb[0].mxu0
    %v904 = vadd.f32 0.0, %v903
    %905 = vdwg.mxu0
    %v906 = vmul.f32 %v902, 0.0625
    %v907 = vmul.f32 %v904, 0.0625
    %v908 = vsub.f32 %v831, %v906
    %v909 = vsub.f32 %v833, %v907
    %v910 = vmul.f32 %v908, 1.442695
    %v911 = vpow.pop %v910
    %v912 = vmul.f32 %v909, 1.442695
    %v913 = vpow.pop %v912
    %v914 = vlaneseq
    %v915 = vshrl.u32 %v914, 7
    %v916 = vsub.s32 0, %v915
    %v917 = vrot.slane %v911, %v916
    %v918 = vlaneseq
    %v919 = vshrl.u32 %v918, 7
    %v920 = vsub.s32 0, %v919
    %v921 = vrot.slane %v913, %v920
    %v922 = vmul.f32 %v777, %v917
    %v923 = vmul.f32 %v779, %v921
    %v924 = vmul.f32 %v783, %v917
    %v925 = vmul.f32 %v785, %v921
    %v926 = vmul.f32 %v789, %v917
    %v927 = vmul.f32 %v791, %v921
    %v928 = vmul.f32 %v795, %v917
    %v929 = vmul.f32 %v797, %v921
    %v930 = vmul.f32 %v801, %v917
    %v931 = vmul.f32 %v803, %v921
    %932 = vmatprep.subr.mxu0 %v67
    %933 = vmatpush1.msra.mxu0 %v66
    %934 = vmatprep.subr.mxu0 %v69
    %935 = vmatpush1.msra.mxu0 %v68
    %936 = vmatprep.subr.mxu0 %v71
    %937 = vmatpush1.msra.mxu0 %v70
    %938 = vmatprep.subr.mxu0 %v73
    %939 = vmatpush1.msra.mxu0 %v72
    %940 = vmatprep.subr.mxu0 %v75
    %941 = vmatpush1.msra.mxu0 %v74
    %942 = vmatprep.subr.mxu0 %v77
    %943 = vmatpush1.msra.mxu0 %v76
    %944 = vmatprep.subr.mxu0 %v79
    %945 = vmatpush1.msra.mxu0 %v78
    %946 = vmatprep.subr.mxu0 %v81
    %947 = vmatpush1.msra.mxu0 %v80
    %948 = vmatprep.subr.mxu0 %v83
    %949 = vmatpush1.msra.mxu0 %v82
    %950 = vmatprep.subr.mxu0 %v85
    %951 = vmatpush1.msra.mxu0 %v84
    %952 = vmatprep.subr.mxu0 %v87
    %953 = vmatpush1.msra.mxu0 %v86
    %954 = vmatprep.subr.mxu0 %v89
    %955 = vmatpush1.msra.mxu0 %v88
    %956 = vmatprep.subr.mxu0 %v91
    %957 = vmatpush1.msra.mxu0 %v90
    %958 = vmatprep.subr.mxu0 %v93
    %959 = vmatpush1.msra.mxu0 %v92
    %960 = vmatprep.subr.mxu0 %v95
    %961 = vmatpush1.msra.mxu0 %v94
    %962 = vmatprep.subr.mxu0 %v97
    %963 = vmatpush1.msra.mxu0 %v96
    %964 = vmatprep.subr.mxu0 %v99
    %965 = vmatpush1.msra.mxu0 %v98
    %966 = vmatprep.subr.mxu0 %v101
    %967 = vmatpush1.msra.mxu0 %v100
    %968 = vmatprep.subr.mxu0 %v103
    %969 = vmatpush1.msra.mxu0 %v102
    %970 = vmatprep.subr.mxu0 %v105
    %971 = vmatpush1.msra.mxu0 %v104
    %972 = vmatprep.subr.mxu0 %v107
    %973 = vmatpush1.msra.mxu0 %v106
    %974 = vmatprep.subr.mxu0 %v109
    %975 = vmatpush1.msra.mxu0 %v108
    %976 = vmatprep.subr.mxu0 %v111
    %977 = vmatpush1.msra.mxu0 %v110
    %978 = vmatprep.subr.mxu0 %v113
    %979 = vmatpush1.msra.mxu0 %v112
    %980 = vmatprep.subr.mxu0 %v115
    %981 = vmatpush1.msra.mxu0 %v114
    %982 = vmatprep.subr.mxu0 %v117
    %983 = vmatpush1.msra.mxu0 %v116
    %984 = vmatprep.subr.mxu0 %v119
    %985 = vmatpush1.msra.mxu0 %v118
    %986 = vmatprep.subr.mxu0 %v121
    %987 = vmatpush1.msra.mxu0 %v120
    %988 = vmatprep.subr.mxu0 %v123
    %989 = vmatpush1.msra.mxu0 %v122
    %990 = vmatprep.subr.mxu0 %v125
    %991 = vmatpush1.msra.mxu0 %v124
    %992 = vmatprep.subr.mxu0 %v127
    %993 = vmatpush1.msra.mxu0 %v126
    %994 = vmatprep.subr.mxu0 %v129
    %995 = vmatpush1.msra.mxu0 %v128
    %996 = vmatprep.mubr.f32.mxu0 %v923
    %997 = vmatmul.mubr.f32.gmra.mrb[0].mxu0 %v922
    %v998 = vpop.f32.mrb[0].mxu0
    %v999 = vadd.f32 0.0, %v998
    %v1000 = vpop.f32.mrb[0].mxu0
    %v1001 = vadd.f32 0.0, %v1000
    %1002 = vmatprep.mubr.f32.mxu0 %v925
    %1003 = vmatmul.mubr.f32.gmra.mrb[0].mxu0 %v924
    %v1004 = vpop.f32.mrb[0].mxu0
    %v1005 = vadd.f32 0.0, %v1004
    %v1006 = vpop.f32.mrb[0].mxu0
    %v1007 = vadd.f32 0.0, %v1006
    %1008 = vmatprep.mubr.f32.mxu0 %v927
    %1009 = vmatmul.mubr.f32.gmra.mrb[0].mxu0 %v926
    %v1010 = vpop.f32.mrb[0].mxu0
    %v1011 = vadd.f32 0.0, %v1010
    %v1012 = vpop.f32.mrb[0].mxu0
    %v1013 = vadd.f32 0.0, %v1012
    %1014 = vmatprep.mubr.f32.mxu0 %v929
    %1015 = vmatmul.mubr.f32.gmra.mrb[0].mxu0 %v928
    %v1016 = vpop.f32.mrb[0].mxu0
    %v1017 = vadd.f32 0.0, %v1016
    %v1018 = vpop.f32.mrb[0].mxu0
    %v1019 = vadd.f32 0.0, %v1018
    %1020 = vmatprep.mubr.f32.mxu0 %v931
    %1021 = vmatmul.mubr.f32.gmra.mrb[0].mxu0 %v930
    %v1022 = vpop.f32.mrb[0].mxu0
    %v1023 = vadd.f32 0.0, %v1022
    %v1024 = vpop.f32.mrb[0].mxu0
    %v1025 = vadd.f32 0.0, %v1024
    %1026 = vdwg.mxu0
    %v1027 = vrcp.pop %v1023
    %v1028 = vmul.f32 1.0, %v1027
    %v1029 = vrcp.pop %v1025
    %v1030 = vmul.f32 1.0, %v1029
    %v1031 = vlaneseq
    %v1032 = vshrl.u32 %v1031, 7
    %v1033 = vsub.s32 0, %v1032
    %v1034 = vrot.slane %v1028, %v1033
    %v1035 = vlaneseq
    %v1036 = vshrl.u32 %v1035, 7
    %v1037 = vsub.s32 0, %v1036
    %v1038 = vrot.slane %v1030, %v1037
    %v1039 = vmul.f32 %v999, %v1034
    %v1040 = vmul.f32 %v1001, %v1038
    %v1041 = vmul.f32 %v1005, %v1034
    %v1042 = vmul.f32 %v1007, %v1038
    %v1043 = vmul.f32 %v1011, %v1034
    %v1044 = vmul.f32 %v1013, %v1038
    %v1045 = vmul.f32 %v1017, %v1034
    %v1046 = vmul.f32 %v1019, %v1038
    %v1047 = vmax.f32 %v807, 0.0
    %v1048 = vmax.f32 %v809, 0.0
    %v1049 = vmax.f32 %v813, 0.0
    %v1050 = vmax.f32 %v815, 0.0
    %v1051 = vmax.f32 %v819, 0.0
    %v1052 = vmax.f32 %v821, 0.0
    %v1053 = vmax.f32 %v825, 0.0
    %v1054 = vmax.f32 %v827, 0.0
    %v1055 = vmul.f32 %v1047, %v1039
    %v1056 = vmul.f32 %v1048, %v1040
    %v1057 = vmul.f32 %v1049, %v1041
    %v1058 = vmul.f32 %v1050, %v1042
    %v1059 = vmul.f32 %v1051, %v1043
    %v1060 = vmul.f32 %v1052, %v1044
    %v1061 = vmul.f32 %v1053, %v1045
    %v1062 = vmul.f32 %v1054, %v1046
    %1063 = vmatprep.subr.mxu0 %v1056
    %1064 = vmatpush1.msra.mxu0 %v1055
    %1065 = vmatprep.subr.mxu0 %v1058
    %1066 = vmatpush1.msra.mxu0 %v1057
    %1067 = vmatprep.subr.mxu0 %v1060
    %1068 = vmatpush1.msra.mxu0 %v1059
    %1069 = vmatprep.subr.mxu0 %v1062
    %1070 = vmatpush1.msra.mxu0 %v1061
    %1071 = vmatprep.subr.mxu0 0.0
    %1072 = vmatpush1.msra.mxu0 0.0
    %1073 = vmatprep.subr.mxu0 0.0
    %1074 = vmatpush1.msra.mxu0 0.0
    %1075 = vmatprep.subr.mxu0 0.0
    %1076 = vmatpush1.msra.mxu0 0.0
    %1077 = vmatprep.subr.mxu0 0.0
    %1078 = vmatpush1.msra.mxu0 0.0
    %1079 = vmatprep.subr.mxu0 0.0
    %1080 = vmatpush1.msra.mxu0 0.0
    %1081 = vmatprep.subr.mxu0 0.0
    %1082 = vmatpush1.msra.mxu0 0.0
    %1083 = vmatprep.subr.mxu0 0.0
    %1084 = vmatpush1.msra.mxu0 0.0
    %1085 = vmatprep.subr.mxu0 0.0
    %1086 = vmatpush1.msra.mxu0 0.0
    %1087 = vmatprep.subr.mxu0 0.0
    %1088 = vmatpush1.msra.mxu0 0.0
    %1089 = vmatprep.subr.mxu0 0.0
    %1090 = vmatpush1.msra.mxu0 0.0
    %1091 = vmatprep.subr.mxu0 0.0
    %1092 = vmatpush1.msra.mxu0 0.0
    %1093 = vmatprep.subr.mxu0 0.0
    %1094 = vmatpush1.msra.mxu0 0.0
    %1095 = vmatprep.subr.mxu0 0.0
    %1096 = vmatpush1.msra.mxu0 0.0
    %1097 = vmatprep.subr.mxu0 0.0
    %1098 = vmatpush1.msra.mxu0 0.0
    %1099 = vmatprep.subr.mxu0 0.0
    %1100 = vmatpush1.msra.mxu0 0.0
    %1101 = vmatprep.subr.mxu0 0.0
    %1102 = vmatpush1.msra.mxu0 0.0
    %1103 = vmatprep.subr.mxu0 0.0
    %1104 = vmatpush1.msra.mxu0 0.0
    %1105 = vmatprep.subr.mxu0 0.0
    %1106 = vmatpush1.msra.mxu0 0.0
    %1107 = vmatprep.subr.mxu0 0.0
    %1108 = vmatpush1.msra.mxu0 0.0
    %1109 = vmatprep.subr.mxu0 0.0
    %1110 = vmatpush1.msra.mxu0 0.0
    %1111 = vmatprep.subr.mxu0 0.0
    %1112 = vmatpush1.msra.mxu0 0.0
    %1113 = vmatprep.subr.mxu0 0.0
    %1114 = vmatpush1.msra.mxu0 0.0
    %1115 = vmatprep.subr.mxu0 0.0
    %1116 = vmatpush1.msra.mxu0 0.0
    %1117 = vmatprep.subr.mxu0 0.0
    %1118 = vmatpush1.msra.mxu0 0.0
    %1119 = vmatprep.subr.mxu0 0.0
    %1120 = vmatpush1.msra.mxu0 0.0
    %1121 = vmatprep.subr.mxu0 0.0
    %1122 = vmatpush1.msra.mxu0 0.0
    %1123 = vmatprep.subr.mxu0 0.0
    %1124 = vmatpush1.msra.mxu0 0.0
    %1125 = vmatprep.subr.mxu0 0.0
    %1126 = vmatpush1.msra.mxu0 0.0
    %1127 = vmatprep.mubr.f32.mxu0 0.0
    %1128 = vmatmul.mubr.f32.gmra.mrb[0].mxu0 %v593
    %v1129 = vpop.f32.mrb[0].mxu0
    %v1130 = vadd.f32 %v575, %v1129
    %v1131 = vpop.f32.mrb[0].mxu0
    %v1132 = vadd.f32 %v575, %v1131
    %1133 = vmatprep.mubr.f32.mxu0 0.0
    %1134 = vmatmul.mubr.f32.gmra.mrb[0].mxu0 %v596
    %v1135 = vpop.f32.mrb[0].mxu0
    %v1136 = vadd.f32 %v580, %v1135
    %v1137 = vpop.f32.mrb[0].mxu0
    %v1138 = vadd.f32 %v580, %v1137
    %1139 = vmatprep.mubr.f32.mxu0 0.0
    %1140 = vmatmul.mubr.f32.gmra.mrb[0].mxu0 %v599
    %v1141 = vpop.f32.mrb[0].mxu0
    %v1142 = vadd.f32 %v585, %v1141
    %v1143 = vpop.f32.mrb[0].mxu0
    %v1144 = vadd.f32 %v585, %v1143
    %1145 = vmatprep.mubr.f32.mxu0 0.0
    %1146 = vmatmul.mubr.f32.gmra.mrb[0].mxu0 %v602
    %v1147 = vpop.f32.mrb[0].mxu0
    %v1148 = vadd.f32 %v590, %v1147
    %v1149 = vpop.f32.mrb[0].mxu0
    %v1150 = vadd.f32 %v590, %v1149
    %1151 = vdwg.mxu0
    %s1152 = scalar_lea.vmem [#allocation5], 64
    %1153 = vst [vmem:[%s1152] sm:$0xff] %v1130
    %1154 = vst [vmem:[%s1152 + $0x8] sm:$0xff] %v1132
    %1155 = vst [vmem:[%s1152 + $0x10] sm:$0xff] %v1136
    %1156 = vst [vmem:[%s1152 + $0x18] sm:$0xff] %v1138
    %1157 = vst [vmem:[%s1152 + $0x20] sm:$0xff] %v1142
    %1158 = vst [vmem:[%s1152 + $0x28] sm:$0xff] %v1144
    %1159 = vst [vmem:[%s1152 + $0x30] sm:$0xff] %v1148
    %1160 = vst [vmem:[%s1152 + $0x38] sm:$0xff] %v1150
    // Predicated region
    $region30: #{tpu_custom_call.1} parent=1 // pred_check
      _
    $region31: #{tpu_custom_call.1} parent=1 // pred_check_branch
      %1162 = sbr.rel (0) target = $region33
    $region32: #{tpu_custom_call.1} parent=1 // pred_region
      %s1164 = ssub.s32 2048, 2048
      %1165 = vsyncadd [#allocation4], %s1164
      %s1166 = sshll.u32 [#allocation5], 4
      %s1167 = int_to_ptr.vmem [resolvable:$true] %s1166
      %1172 = dma.vmem_to_hbm [thread:$0]  %s1167, 2048, %s6, [#allocation4], 256, 256, 16
    $region33: #{tpu_custom_call.1} parent=1 // pred_fallthru
      _
    // Predicated region
    $region34: #{tpu_custom_call.1} parent=1 // pred_check
      _
    $region35: #{tpu_custom_call.1} parent=1 // pred_check_branch
      %1174 = sbr.rel (0) target = $region37
    $region36: #{tpu_custom_call.1} parent=1 // pred_region
      %1175 = dma.done [#allocation4], 2048
    $region37: #{tpu_custom_call.1} parent=1 // pred_fallthru
      _
    %1176 = vsyncpa [#allocation3], 1
    %1177 = vsyncpa [#allocation4], 1

</llo_original>
